<compile_context>
chip_gen: v7x
topology: tpu7x:2x2x1
jax: 0.10.0
libtpu: 0.0.40
codegen_flags: <defaults>
</compile_context>

<pallas_src>
import functools
import inspect

import jax
import jax.numpy as jnp
from jax import lax
from jax.experimental import pallas as pl
from jax.experimental.pallas import tpu as pltpu


def _round_up(a, b):
    return ((a + b - 1) // b) * b


def _cdiv(a, b):
    return (a + b - 1) // b


def _supports_single_buffer():
    try:
        return (hasattr(pl, "Buffered")
                and "pipeline_mode" in inspect.signature(pl.BlockSpec).parameters)
    except (TypeError, ValueError):
        return False


_SINGLE_BUFFER_OK = _supports_single_buffer()


def _spec(shape, index_map, single_buffer=False):
    """BlockSpec; grid-invariant operands get a single pipeline buffer."""
    if single_buffer and _SINGLE_BUFFER_OK:
        return pl.BlockSpec(shape, index_map, pipeline_mode=pl.Buffered(1))
    return pl.BlockSpec(shape, index_map)


def _vmem_budget_bytes():
    """~75% of physical VMEM (capped at 96 MiB) so Mosaic keeps headroom."""
    cap = None
    try:
        cap = int(pltpu.get_tpu_info().vmem_capacity_bytes)
    except Exception:
        cap = None
    if not cap or cap <= 0:
        cap = 64 * 1024 * 1024            # conservative fallback (v7x physical)
    return min((cap * 3) // 4, 96 * 1024 * 1024)


def _pick_h_tile(H, target):
    """Largest multiple-of-128 divisor of H that is <= target; else full H."""
    if H % 128 != 0:
        return H
    tk = min(_round_up(max(target, 128), 128), H)
    tk = max((tk // 128) * 128, 128)
    while H % tk != 0:
        tk -= 128
    return max(tk, 128)


# ---------------------------------------------------------------------------
# Dropout: stateless hash of (seed, global row, global col).  Row and column
# indices are hashed once on (tm,1)/(1,th) iotas, then combined with one xor +
# one mul + one xorshift per element (pure u32 VPU work, tiling-invariant,
# no pltpu.prng_*).  The 1/(1-p) scale is folded into W2 in the wrapper.
# ---------------------------------------------------------------------------
def _hash_u32(z):
    z = z ^ (z >> 16)
    z = z * jnp.uint32(0x7FEB352D)
    z = z ^ (z >> 15)
    z = z * jnp.uint32(0x846CA68B)
    z = z ^ (z >> 16)
    return z


def _dropout_keep(shape, seed_u32, row_base, col_base, p_drop):
    tm, th = shape
    rows = (lax.broadcasted_iota(jnp.int32, (tm, 1), 0) + row_base).astype(jnp.uint32)
    cols = (lax.broadcasted_iota(jnp.int32, (1, th), 1) + col_base).astype(jnp.uint32)
    rh = _hash_u32(rows ^ (seed_u32 * jnp.uint32(0x9E3779B9)))
    ch = _hash_u32(cols * jnp.uint32(0x85EBCA6B) + jnp.uint32(0x27D4EB2F))
    z = rh ^ ch                        # broadcast to (tm, th): 1 xor / elem
    z = z * jnp.uint32(0x9E3779B1)     # 1 mul / elem
    z = z ^ (z >> 16)                  # 1 shift + 1 xor / elem
    threshold = jnp.uint32(min(int(round(p_drop * 2.0 ** 32)), 2 ** 32 - 1))
    return z >= threshold


def _ffn_hidden(x_ref, w1_ref, b1_ref, seed_ref, row_base, col_base, *,
                apply_dropout, p_drop):
    # In-kernel bf16 cast of x (cheap VPU work hidden under the MXU).
    x = x_ref[...].astype(jnp.bfloat16)
    h = jnp.dot(x, w1_ref[...], preferred_element_type=jnp.float32)
    h = h + b1_ref[...]
    h = jnp.maximum(h, 0.0)
    if apply_dropout:
        keep = _dropout_keep(h.shape, seed_ref[0].astype(jnp.uint32),
                             row_base, col_base, p_drop)
        h = jnp.where(keep, h, 0.0)    # 1/(1-p) scale folded into W2
    return h


def ffn_kernel_resident(seed_ref, x_ref, w1_ref, b1_ref, w2_ref, b2_ref, o_ref, *,
                        p_drop, apply_dropout, tile_rows):
    """Weights fully resident in VMEM; one grid step per row tile."""
    h = _ffn_hidden(x_ref, w1_ref, b1_ref, seed_ref,
                    pl.program_id(0) * tile_rows, 0,
                    apply_dropout=apply_dropout, p_drop=p_drop)
    y = jnp.dot(h.astype(jnp.bfloat16), w2_ref[...],
                preferred_element_type=jnp.float32)
    o_ref[...] = (y + b2_ref[...]).astype(o_ref.dtype)


def ffn_kernel_chunked(seed_ref, x_ref, w1_ref, b1_ref, w2_ref, b2_ref, o_ref,
                       acc_ref, *, p_drop, apply_dropout, tile_rows, tile_h):
    """H streamed in chunks; linear2 partials accumulate in f32 VMEM scratch."""
    hk = pl.program_id(1)

    @pl.when(hk == 0)
    def _init():
        acc_ref[...] = jnp.zeros_like(acc_ref)

    h = _ffn_hidden(x_ref, w1_ref, b1_ref, seed_ref,
                    pl.program_id(0) * tile_rows, hk * tile_h,
                    apply_dropout=apply_dropout, p_drop=p_drop)
    acc_ref[...] += jnp.dot(h.astype(jnp.bfloat16), w2_ref[...],
                            preferred_element_type=jnp.float32)

    @pl.when(hk == pl.num_programs(1) - 1)
    def _finalize():
        o_ref[...] = (acc_ref[...] + b2_ref[...]).astype(o_ref.dtype)


def feedforward_block(x, w1, b1, w2, b2, *, p_drop=0.1, training=False,
                      seed=0, tile_rows=512, tile_h=512):
    """x: (B, S, D); w1: (D, H); b1: (H,); w2: (H, D); b2: (D,)."""
    B, S, D = x.shape
    H = w1.shape[1]
    N = B * S
    apply_dropout = bool(training) and float(p_drop) > 0.0

    x2 = x.reshape(N, D)               # no wrapper-side cast / pad over x

    # --- row tile -----------------------------------------------------------
    tm = _round_up(min(int(tile_rows), _round_up(N, 8)), 8)
    # v7x megacore: keep >= 2 tiles on the parallel row axis when possible.
    while tm > 8 and _cdiv(N, tm) < 2:
        tm = max(8, _round_up(tm // 2, 8))

    xb = x.dtype.itemsize
    ob = x.dtype.itemsize
    budget = _vmem_budget_bytes()
    w_buf_factor = 1 if _SINGLE_BUFFER_OK else 2

    def resident_fp(tm_):
        return (w_buf_factor * 2 * D * H * 2      # bf16 W1 + W2, resident
                + 2 * tm_ * D * (xb + ob)         # double-buffered x / out tiles
                + tm_ * H * 12                    # h f32 + bf16 copy + dropout temps
                + 4 * (H + D) * 4)                # biases

    def chunked_fp(tm_, th_):
        return (2 * 2 * D * th_ * 2               # bf16 W1/W2 chunks, double-buffered
                + 2 * tm_ * D * (xb + ob)
                + tm_ * D * 4                     # f32 accumulator scratch
                + tm_ * th_ * 12
                + 4 * (th_ + D) * 4)

    use_resident = resident_fp(tm) <= budget
    if not use_resident:
        tm_small = max(8, _round_up(min(tm, 256), 8))
        if tm_small < tm and resident_fp(tm_small) <= budget:
            tm = tm_small
            use_resident = True

    th = H
    if not use_resident:
        th = _pick_h_tile(H, int(tile_h))
        if H % 128 == 0:
            while th > 128 and chunked_fp(tm, th) > budget:
                th = _pick_h_tile(H, th - 128)
        while tm > 128 and chunked_fp(tm, th) > budget:
            tm = max(128, _round_up(tm // 2, 8))

    num_row_tiles = _cdiv(N, tm)

    # --- operands -----------------------------------------------------------
    w1b = w1.astype(jnp.bfloat16)
    w2_eff = w2 * (1.0 / (1.0 - float(p_drop))) if apply_dropout else w2
    w2b = w2_eff.astype(jnp.bfloat16)
    b1_2d = b1.reshape(1, H).astype(jnp.float32)
    b2_2d = b2.reshape(1, D).astype(jnp.float32)
    seed_arr = jnp.array([seed], dtype=jnp.int32)

    if use_resident:
        kernel = functools.partial(
            ffn_kernel_resident, p_drop=float(p_drop),
            apply_dropout=apply_dropout, tile_rows=tm)
        grid_spec = pltpu.PrefetchScalarGridSpec(
            num_scalar_prefetch=1,                 # seed lives in SMEM
            grid=(num_row_tiles,),
            in_specs=[
                _spec((tm, D), lambda i, seed: (i, 0)),
                _spec((D, H), lambda i, seed: (0, 0), single_buffer=True),
                _spec((1, H), lambda i, seed: (0, 0), single_buffer=True),
                _spec((H, D), lambda i, seed: (0, 0), single_buffer=True),
                _spec((1, D), lambda i, seed: (0, 0), single_buffer=True),
            ],
            out_specs=pl.BlockSpec((tm, D), lambda i, seed: (i, 0)),
        )
        dim_sem = ("parallel",)
    else:
        kernel = functools.partial(
            ffn_kernel_chunked, p_drop=float(p_drop),
            apply_dropout=apply_dropout, tile_rows=tm, tile_h=th)
        grid_spec = pltpu.PrefetchScalarGridSpec(
            num_scalar_prefetch=1,
            grid=(num_row_tiles, H // th),         # reduction (hk) axis last
            in_specs=[
                _spec((tm, D), lambda i, hk, seed: (i, 0)),
                _spec((D, th), lambda i, hk, seed: (0, hk)),
                _spec((1, th), lambda i, hk, seed: (0, hk)),
                _spec((th, D), lambda i, hk, seed: (hk, 0)),
                _spec((1, D), lambda i, hk, seed: (0, 0), single_buffer=True),
            ],
            out_specs=pl.BlockSpec((tm, D), lambda i, hk, seed: (i, 0)),
            scratch_shapes=[pltpu.VMEM((tm, D), jnp.float32)],
        )
        dim_sem = ("parallel", "arbitrary")

    out = pl.pallas_call(
        kernel,
        out_shape=jax.ShapeDtypeStruct((N, D), x.dtype),
        grid_spec=grid_spec,
        compiler_params=pltpu.CompilerParams(
            dimension_semantics=dim_sem,
            vmem_limit_bytes=int(budget)),
    )(seed_arr, x2, w1b, b1_2d, w2b, b2_2d)

    return out.reshape(B, S, D)


def init_params(key, d_model, hidden_size):
    """Deterministic PyTorch-style (uniform +-1/sqrt(fan_in)) initialization."""
    k1, k2, k3, k4 = jax.random.split(key, 4)
    lim1 = 1.0 / (d_model ** 0.5)
    lim2 = 1.0 / (hidden_size ** 0.5)
    w1 = jax.random.uniform(k1, (d_model, hidden_size), jnp.float32, -lim1, lim1)
    b1 = jax.random.uniform(k2, (hidden_size,), jnp.float32, -lim1, lim1)
    w2 = jax.random.uniform(k3, (hidden_size, d_model), jnp.float32, -lim2, lim2)
    b2 = jax.random.uniform(k4, (d_model,), jnp.float32, -lim2, lim2)
    return w1, b1, w2, b2


if __name__ == "__main__":
    batch, seq, d_model, hidden = 2, 8, 32, 64

    key = jax.random.PRNGKey(0)
    kx, kp = jax.random.split(key)
    x = jax.random.normal(kx, (batch, seq, d_model), jnp.float32)
    w1, b1, w2, b2 = init_params(kp, d_model, hidden)

    # Eval mode (dropout = identity): compare against a pure-JAX reference that
    # applies the same bf16 rounding to the MXU operands.
    y = feedforward_block(x, w1, b1, w2, b2, p_drop=0.1, training=False)
    y = jax.block_until_ready(y)

    xb = x.reshape(-1, d_model).astype(jnp.bfloat16).astype(jnp.float32)
    w1f = w1.astype(jnp.bfloat16).astype(jnp.float32)
    w2f = w2.astype(jnp.bfloat16).astype(jnp.float32)
    h_ref = jnp.maximum(xb @ w1f + b1, 0.0)
    y_ref = h_ref.astype(jnp.bfloat16).astype(jnp.float32) @ w2f + b2
    y_ref = y_ref.reshape(batch, seq, d_model)
    assert jnp.allclose(y, y_ref, atol=2e-2, rtol=2e-2), "mismatch vs reference"

    # Training mode: exercises the in-kernel hash-based dropout path.
    # TODO(synk): dropout mask does not bit-match torch's RNG stream; the
    # semantics (Bernoulli keep prob 1-p, 1/(1-p) scaling) do match.
    y_train = feedforward_block(x, w1, b1, w2, b2, p_drop=0.1, training=True,
                                seed=123)
    y_train = jax.block_until_ready(y_train)
    assert y_train.shape == (batch, seq, d_model)
    assert bool(jnp.all(jnp.isfinite(y_train)))

    print("KERNEL_OK")
</pallas_src>

<mosaic_0001>
module attributes {stable_mosaic.version = 11 : i64} {
  func.func @ffn_kernel_resident(%arg0: i32, %arg1: memref<1xi32, #tpu.memory_space<smem>>, %arg2: memref<8x32xf32, #tpu.memory_space<vmem>>, %arg3: memref<32x64xbf16, #tpu.memory_space<vmem>>, %arg4: memref<1x64xf32, #tpu.memory_space<vmem>>, %arg5: memref<64x32xbf16, #tpu.memory_space<vmem>>, %arg6: memref<1x32xf32, #tpu.memory_space<vmem>>, %arg7: memref<8x32xf32, #tpu.memory_space<vmem>>) attributes {dimension_semantics = [#tpu.dimension_semantics<parallel>], iteration_bounds = array<i64: 2>, scalar_prefetch = 1 : i64, scratch_operands = 0 : i64, tpu.core_type = #tpu.core_type<tc>, window_params = [{transform_indices = @transform_0, window_bounds = array<i64: 8, 32>}, {pipeline_mode = #tpu.pipeline_mode<synchronous>, transform_indices = @transform_1, window_bounds = array<i64: 32, 64>}, {pipeline_mode = #tpu.pipeline_mode<synchronous>, transform_indices = @transform_2, window_bounds = array<i64: 1, 64>}, {pipeline_mode = #tpu.pipeline_mode<synchronous>, transform_indices = @transform_3, window_bounds = array<i64: 64, 32>}, {pipeline_mode = #tpu.pipeline_mode<synchronous>, transform_indices = @transform_4, window_bounds = array<i64: 1, 32>}, {transform_indices = @transform_5, window_bounds = array<i64: 8, 32>}]} {
    %c0 = arith.constant 0 : index
    %c0_0 = arith.constant 0 : index
    %0 = vector.load %arg2[%c0, %c0_0] : memref<8x32xf32, #tpu.memory_space<vmem>>, vector<8x32xf32>
    %1 = arith.truncf %0 : vector<8x32xf32> to vector<8x32xbf16>
    %c0_1 = arith.constant 0 : index
    %c0_2 = arith.constant 0 : index
    %2 = vector.load %arg3[%c0_1, %c0_2] : memref<32x64xbf16, #tpu.memory_space<vmem>>, vector<32x64xbf16>
    %cst = arith.constant dense<0.000000e+00> : vector<8x64xf32>
    %3 = tpu.matmul %1, %2, %cst {dimension_numbers = #tpu.dot_dimension_numbers<[1], [0], [0], [1], [0, 0, 1, 1], [], []>} : vector<8x32xbf16>, vector<32x64xbf16>, vector<8x64xf32> -> vector<8x64xf32>
    %c0_3 = arith.constant 0 : index
    %c0_4 = arith.constant 0 : index
    %4 = vector.load %arg4[%c0_3, %c0_4] : memref<1x64xf32, #tpu.memory_space<vmem>>, vector<1x64xf32>
    %5 = vector.broadcast %4 : vector<1x64xf32> to vector<8x64xf32>
    %6 = arith.addf %3, %5 : vector<8x64xf32>
    %cst_5 = arith.constant 0.000000e+00 : f32
    %7 = vector.broadcast %cst_5 : f32 to vector<8x64xf32>
    %8 = arith.maximumf %6, %7 : vector<8x64xf32>
    %9 = arith.truncf %8 : vector<8x64xf32> to vector<8x64xbf16>
    %c0_6 = arith.constant 0 : index
    %c0_7 = arith.constant 0 : index
    %10 = vector.load %arg5[%c0_6, %c0_7] : memref<64x32xbf16, #tpu.memory_space<vmem>>, vector<64x32xbf16>
    %cst_8 = arith.constant dense<0.000000e+00> : vector<8x32xf32>
    %11 = tpu.matmul %9, %10, %cst_8 {dimension_numbers = #tpu.dot_dimension_numbers<[1], [0], [0], [1], [0, 0, 1, 1], [], []>} : vector<8x64xbf16>, vector<64x32xbf16>, vector<8x32xf32> -> vector<8x32xf32>
    %c0_9 = arith.constant 0 : index
    %c0_10 = arith.constant 0 : index
    %12 = vector.load %arg6[%c0_9, %c0_10] : memref<1x32xf32, #tpu.memory_space<vmem>>, vector<1x32xf32>
    %13 = vector.broadcast %12 : vector<1x32xf32> to vector<8x32xf32>
    %14 = arith.addf %11, %13 : vector<8x32xf32>
    %c0_11 = arith.constant 0 : index
    %c0_12 = arith.constant 0 : index
    %15 = vector.load %arg7[%c0_11, %c0_12] : memref<8x32xf32, #tpu.memory_space<vmem>>, vector<8x32xf32>
    tpu.vector_store %arg7[%c0_11, %c0_12], %14 {strides = array<i32>} : memref<8x32xf32, #tpu.memory_space<vmem>>, vector<8x32xf32>,
    return
  }
  func.func @transform_0(%arg0: i32, %arg1: memref<1xi32, #tpu.memory_space<smem>>) -> (i32, i32) {
    %c0_i32 = arith.constant 0 : i32
    %c0_i32_0 = arith.constant 0 : i32
    return %arg0, %c0_i32 : i32, i32
  }
  func.func @transform_1(%arg0: i32, %arg1: memref<1xi32, #tpu.memory_space<smem>>) -> (i32, i32) {
    %c0_i32 = arith.constant 0 : i32
    %c0_i32_0 = arith.constant 0 : i32
    %c0_i32_1 = arith.constant 0 : i32
    return %c0_i32, %c0_i32_0 : i32, i32
  }
  func.func @transform_2(%arg0: i32, %arg1: memref<1xi32, #tpu.memory_space<smem>>) -> (i32, i32) {
    %c0_i32 = arith.constant 0 : i32
    %c0_i32_0 = arith.constant 0 : i32
    %c0_i32_1 = arith.constant 0 : i32
    return %c0_i32, %c0_i32_0 : i32, i32
  }
  func.func @transform_3(%arg0: i32, %arg1: memref<1xi32, #tpu.memory_space<smem>>) -> (i32, i32) {
    %c0_i32 = arith.constant 0 : i32
    %c0_i32_0 = arith.constant 0 : i32
    %c0_i32_1 = arith.constant 0 : i32
    return %c0_i32, %c0_i32_0 : i32, i32
  }
  func.func @transform_4(%arg0: i32, %arg1: memref<1xi32, #tpu.memory_space<smem>>) -> (i32, i32) {
    %c0_i32 = arith.constant 0 : i32
    %c0_i32_0 = arith.constant 0 : i32
    %c0_i32_1 = arith.constant 0 : i32
    return %c0_i32, %c0_i32_0 : i32, i32
  }
  func.func @transform_5(%arg0: i32, %arg1: memref<1xi32, #tpu.memory_space<smem>>) -> (i32, i32) {
    %c0_i32 = arith.constant 0 : i32
    %c0_i32_0 = arith.constant 0 : i32
    return %arg0, %c0_i32 : i32, i32
  }
}

</mosaic_0001>

<llo_original>
// kernel: tpu_custom_call.1
$region0: #{tpu_custom_call.1}
  #allocation0 [shape = 'u32[]', space=smem, size = 0x4, offset = 0x4, fixed_abs, tag = 'smem constant byte address 0x4 - core index']
  #allocation1 [shape = 'u32[144,128]{1,0:T(1,128)}', space=vmem, size = 0x12000, scoped, tag = 'internal scratch']
  #allocation2 [shape = 's32[1]{0}', space=sflag, size = 0x4, scoped, tag = 'scoped memory for tpu_custom_call.1']
  #allocation3 [shape = 's32[1]{0:T(128)S(6)}', space=smem, size = 0x200, scoped, tag = 'prefetched SMEM operand 0']
  %s0 = inlined_call_operand.<no memory space> [shape: s32[1], index: 0, kind: input, shape index: {}]
  %s1 = inlined_call_operand.vmem [shape: f32[16,32], index: 1, kind: input, shape index: {}]
  %s2 = inlined_call_operand.vmem [shape: bf16[32,64], index: 2, kind: input, shape index: {}]
  %s3 = inlined_call_operand.vmem [shape: f32[1,64], index: 3, kind: input, shape index: {}]
  %s4 = inlined_call_operand.vmem [shape: bf16[64,32], index: 4, kind: input, shape index: {}]
  %s5 = inlined_call_operand.vmem [shape: f32[1,32], index: 5, kind: input, shape index: {}]
  %s6 = inlined_call_operand.hbm [shape: f32[16,32], index: 6, kind: output, shape index: {}]
  %s7 = sld [smem:[#allocation0]]
  $region53: #{tpu_custom_call.1} parent=0
    _
  %s9 = ssub.s32 1, %s7
  %s10 = scalar_select 0, %s9, %s7
  %11 = sst [smem:[#allocation3]] %s0
  $region1: #{tpu_custom_call.1} parent=0
    #allocation4 [shape = 'u8[8192]{0}', space=vmem, size = 0x2000, scoped, tag = 'output window, operand 0']
    #allocation5 [shape = 's32[2]{0}', space=sflag, size = 0x8, scoped, tag = 'scoped memory for tpu_custom_call.1']
    %12 = vsyncpa [#allocation5], 0
    %s13 = scalar_lea.sflag [#allocation5], 1
    %14 = vsyncpa %s13, 0
    loop: start=0, step=1, limit=4
    $region2: #{tpu_custom_call.1} parent=1 // loop_pre_header
      _
    $region3: #{tpu_custom_call.1} parent=1 // loop_header
      %s16 = sphi 0, %s20
      %p17 = scmp.ge.s32.totalorder %s16, 4
      %s26 = sphi 0, %s28
      %s29 = sphi 0, %s26
      %s30 = sphi 0, %s29
      %s46 = sphi 0, %s30
      %s50 = sphi 0, %s50
      %s52 = sphi 0, %s50
      %s53 = sphi 0, %s52
      %s67 = sphi 0, %s53
      %s71 = sphi 0, %s71
      %s73 = sphi 0, %s71
      %s74 = sphi 0, %s73
      %s88 = sphi 0, %s74
      %s92 = sphi 0, %s92
      %s94 = sphi 0, %s92
      %s95 = sphi 0, %s94
      %s109 = sphi 0, %s95
      %s113 = sphi 0, %s113
      %s115 = sphi 0, %s113
      %s116 = sphi 0, %s115
      %s130 = sphi 0, %s116
      %s136 = sphi 0, %s138
      %s139 = sphi 0, %s136
      %s140 = sphi 0, %s139
      %s156 = sphi 0, %s140
    $region4: #{tpu_custom_call.1} parent=1 // loop_header_branch
      %19 = sbr.rel (%p17) target = $region8
    $region5: #{tpu_custom_call.1} parent=1 // loop_body
      %s21 = ssub.s32 %s16, 1
      %s22 = ssub.s32 %s16, 2
      %s23 = sadd.s32 %s16, 1
      %s24 = ssub.s32 %s16, %s23
      %p25 = scmp.eq.s32.totalorder %s24, 0
      %s27 = sadd.s32 %s26, 1
      %s28 = scalar_select %p25, %s26, %s27
      %p31 = pneg %p25
      %p32 = scmp.eq.s32.totalorder %s16, 1
      %p33 = por %p31, %p32
      %p34 = scmp.ne.s32.totalorder %s26, %s29
      %p35 = scmp.eq.s32.totalorder %s16, 0
      %p36 = por %p34, %p35
      %p37 = scmp.ne.s32.totalorder %s26, %s29
      %p38 = scmp.eq.s32.totalorder %s21, 1
      %p39 = por %p37, %p38
      %p40 = scmp.ne.s32.totalorder %s29, %s30
      %p41 = scmp.eq.s32.totalorder %s21, 0
      %p42 = por %p40, %p41
      %p43 = scmp.ne.s32.totalorder %s29, %s30
      %p44 = scmp.eq.s32.totalorder %s22, 1
      %p45 = por %p43, %p44
      %p47 = scmp.ne.s32.totalorder %s30, %s46
      %p48 = scmp.eq.s32.totalorder %s22, 0
      %p49 = por %p47, %p48
      %s51 = sadd.s32 %s50, 1
      %p54 = scmp.eq.s32.totalorder %s16, 1
      %p55 = scmp.ne.s32.totalorder %s50, %s52
      %p56 = scmp.eq.s32.totalorder %s16, 0
      %p57 = por %p55, %p56
      %p58 = scmp.ne.s32.totalorder %s50, %s52
      %p59 = scmp.eq.s32.totalorder %s21, 1
      %p60 = por %p58, %p59
      %p61 = scmp.ne.s32.totalorder %s52, %s53
      %p62 = scmp.eq.s32.totalorder %s21, 0
      %p63 = por %p61, %p62
      %p64 = scmp.ne.s32.totalorder %s52, %s53
      %p65 = scmp.eq.s32.totalorder %s22, 1
      %p66 = por %p64, %p65
      %p68 = scmp.ne.s32.totalorder %s53, %s67
      %p69 = scmp.eq.s32.totalorder %s22, 0
      %p70 = por %p68, %p69
      %s72 = sadd.s32 %s71, 1
      %p75 = scmp.eq.s32.totalorder %s16, 1
      %p76 = scmp.ne.s32.totalorder %s71, %s73
      %p77 = scmp.eq.s32.totalorder %s16, 0
      %p78 = por %p76, %p77
      %p79 = scmp.ne.s32.totalorder %s71, %s73
      %p80 = scmp.eq.s32.totalorder %s21, 1
      %p81 = por %p79, %p80
      %p82 = scmp.ne.s32.totalorder %s73, %s74
      %p83 = scmp.eq.s32.totalorder %s21, 0
      %p84 = por %p82, %p83
      %p85 = scmp.ne.s32.totalorder %s73, %s74
      %p86 = scmp.eq.s32.totalorder %s22, 1
      %p87 = por %p85, %p86
      %p89 = scmp.ne.s32.totalorder %s74, %s88
      %p90 = scmp.eq.s32.totalorder %s22, 0
      %p91 = por %p89, %p90
      %s93 = sadd.s32 %s92, 1
      %p96 = scmp.eq.s32.totalorder %s16, 1
      %p97 = scmp.ne.s32.totalorder %s92, %s94
      %p98 = scmp.eq.s32.totalorder %s16, 0
      %p99 = por %p97, %p98
      %p100 = scmp.ne.s32.totalorder %s92, %s94
      %p101 = scmp.eq.s32.totalorder %s21, 1
      %p102 = por %p100, %p101
      %p103 = scmp.ne.s32.totalorder %s94, %s95
      %p104 = scmp.eq.s32.totalorder %s21, 0
      %p105 = por %p103, %p104
      %p106 = scmp.ne.s32.totalorder %s94, %s95
      %p107 = scmp.eq.s32.totalorder %s22, 1
      %p108 = por %p106, %p107
      %p110 = scmp.ne.s32.totalorder %s95, %s109
      %p111 = scmp.eq.s32.totalorder %s22, 0
      %p112 = por %p110, %p111
      %s114 = sadd.s32 %s113, 1
      %p117 = scmp.eq.s32.totalorder %s16, 1
      %p118 = scmp.ne.s32.totalorder %s113, %s115
      %p119 = scmp.eq.s32.totalorder %s16, 0
      %p120 = por %p118, %p119
      %p121 = scmp.ne.s32.totalorder %s113, %s115
      %p122 = scmp.eq.s32.totalorder %s21, 1
      %p123 = por %p121, %p122
      %p124 = scmp.ne.s32.totalorder %s115, %s116
      %p125 = scmp.eq.s32.totalorder %s21, 0
      %p126 = por %p124, %p125
      %p127 = scmp.ne.s32.totalorder %s115, %s116
      %p128 = scmp.eq.s32.totalorder %s22, 1
      %p129 = por %p127, %p128
      %p131 = scmp.ne.s32.totalorder %s116, %s130
      %p132 = scmp.eq.s32.totalorder %s22, 0
      %p133 = por %p131, %p132
      %s134 = ssub.s32 %s16, %s23
      %p135 = scmp.eq.s32.totalorder %s134, 0
      %s137 = sadd.s32 %s136, 1
      %s138 = scalar_select %p135, %s136, %s137
      %p141 = pneg %p135
      %p142 = scmp.eq.s32.totalorder %s16, 1
      %p143 = por %p141, %p142
      %p144 = scmp.ne.s32.totalorder %s136, %s139
      %p145 = scmp.eq.s32.totalorder %s16, 0
      %p146 = por %p144, %p145
      %p147 = scmp.ne.s32.totalorder %s136, %s139
      %p148 = scmp.eq.s32.totalorder %s21, 1
      %p149 = por %p147, %p148
      %p150 = scmp.ne.s32.totalorder %s139, %s140
      %p151 = scmp.eq.s32.totalorder %s21, 0
      %p152 = por %p150, %p151
      %p153 = scmp.ne.s32.totalorder %s139, %s140
      %p154 = scmp.eq.s32.totalorder %s22, 1
      %p155 = por %p153, %p154
      %p157 = scmp.ne.s32.totalorder %s140, %s156
      %p158 = scmp.eq.s32.totalorder %s22, 0
      %p159 = por %p157, %p158
      %p160 = scmp.le.s32.totalorder 1, %s16
      %p161 = scmp.lt.s32.totalorder %s16, 3
      %p162 = pnand %p160, %p161
      %p163 = pneg %p162
      // Predicated region
      $region9: #{tpu_custom_call.1} parent=5 // pred_check
        _
      $region10: #{tpu_custom_call.1} parent=5 // pred_check_branch
        %165 = sbr.rel (%p162) target = $region12
      $region11: #{tpu_custom_call.1} parent=5 // pred_region
        %s166 = ssub.s32 %s16, 1
        // Predicated region
        $region13: #{tpu_custom_call.1} parent=11 // pred_check
          %p167 = pneg %p63
        $region14: #{tpu_custom_call.1} parent=11 // pred_check_branch
          %169 = sbr.rel (%p167) target = $region16
        $region15: #{tpu_custom_call.1} parent=11 // pred_region
          _
        $region16: #{tpu_custom_call.1} parent=11 // pred_fallthru
          _
        // Predicated region
        $region17: #{tpu_custom_call.1} parent=11 // pred_check
          %p170 = pneg %p84
        $region18: #{tpu_custom_call.1} parent=11 // pred_check_branch
          %172 = sbr.rel (%p170) target = $region20
        $region19: #{tpu_custom_call.1} parent=11 // pred_region
          _
        $region20: #{tpu_custom_call.1} parent=11 // pred_fallthru
          _
        // Predicated region
        $region21: #{tpu_custom_call.1} parent=11 // pred_check
          %p173 = pneg %p105
        $region22: #{tpu_custom_call.1} parent=11 // pred_check_branch
          %175 = sbr.rel (%p173) target = $region24
        $region23: #{tpu_custom_call.1} parent=11 // pred_region
          _
        $region24: #{tpu_custom_call.1} parent=11 // pred_fallthru
          _
        // Predicated region
        $region25: #{tpu_custom_call.1} parent=11 // pred_check
          %p176 = pneg %p126
        $region26: #{tpu_custom_call.1} parent=11 // pred_check_branch
          %178 = sbr.rel (%p176) target = $region28
        $region27: #{tpu_custom_call.1} parent=11 // pred_region
          _
        $region28: #{tpu_custom_call.1} parent=11 // pred_fallthru
          _
      $region12: #{tpu_custom_call.1} parent=5 // pred_fallthru
        _
      %p179 = scmp.lt.s32.totalorder %s16, 2
      // Predicated region
      $region29: #{tpu_custom_call.1} parent=5 // pred_check
        %p180 = pneg %p179
      $region30: #{tpu_custom_call.1} parent=5 // pred_check_branch
        %182 = sbr.rel (%p180) target = $region32
      $region31: #{tpu_custom_call.1} parent=5 // pred_region
        // Predicated region
        $region33: #{tpu_custom_call.1} parent=31 // pred_check
          %p183 = pneg %p36
        $region34: #{tpu_custom_call.1} parent=31 // pred_check_branch
          %185 = sbr.rel (%p183) target = $region36
        $region35: #{tpu_custom_call.1} parent=31 // pred_region
          %p186 = scmp.lt.s32.totalorder %s16, 1
          %s187 = scalar_select %p186, %s16, 1
          %s188 = smul.addr %s187, 8
          %s189 = scalar_lea.vmem %s1, %s188
        $region36: #{tpu_custom_call.1} parent=31 // pred_fallthru
          _
      $region32: #{tpu_custom_call.1} parent=5 // pred_fallthru
        _
      %p190 = scmp.le.s32.totalorder 1, %s16
      %p191 = scmp.lt.s32.totalorder %s16, 3
      %p192 = pnand %p190, %p191
      %p193 = pneg %p192
      // Predicated region
      $region37: #{tpu_custom_call.1} parent=5 // pred_check
        _
      $region38: #{tpu_custom_call.1} parent=5 // pred_check_branch
        %195 = sbr.rel (%p192) target = $region40
      $region39: #{tpu_custom_call.1} parent=5 // pred_region
        %s196 = ssub.s32 %s16, 1
        %p197 = scmp.lt.s32.totalorder %s21, 1
        %s198 = scalar_select %p197, %s21, 1
        %s199 = smul.addr %s198, 8
        %s200 = scalar_lea.vmem %s1, %s199
        %p201 = pneg %p42
        %p202 = pneg %p39
        %p203 = pneg %p63
        %p204 = pneg %p60
        %p205 = pneg %p84
        %p206 = pneg %p81
        %p207 = pneg %p105
        %p208 = pneg %p102
        %p209 = pneg %p126
        %p210 = pneg %p123
        %p211 = pneg %p152
        %p212 = pneg %p149
        %s213 = sand.u32 %s139, 1
        %s214 = scalar_lea.sflag [#allocation5], %s213
        %s215 = sand.u32 %s139, 1
        %s216 = smul.addr %s215, 8
        %s217 = scalar_lea.vmem [#allocation4], %s216
        %p218 = scmp.lt.s32.totalorder %s21, 1
        %s219 = scalar_select %p218, %s21, 1
        %s220 = smul.addr %s219, 8
        %s221 = scalar_lea.vmem %s1, %s220
        %v223 = vld [vmem:[%s221] sm:$0xff]
        %v224 = vpack.c.bf16 %v223, %v223
        %v225 = vld [vmem:[%s2] sm:$0xf]
        %v226 = vld [vmem:[%s2 + $0x4] sm:$0xf]
        %v227 = vld [vmem:[%s2 + $0x8] sm:$0xf]
        %v228 = vld [vmem:[%s2 + $0xc] sm:$0xf]
        %v229 = vld [vmem:[%s3] sm:$0x1]
        %v231 = vlaneseq
        %v232 = vshrl.u32 %v231, 7
        %v233 = vsub.s32 0, %v232
        %v234 = vrot.slane %v229, %v233
        %v240 = vunpack.c.l.b16 %v225
        %v241 = vunpack.c.l.b16 %v226
        %v242 = vunpack.c.l.b16 %v227
        %v243 = vunpack.c.l.b16 %v228
        %v244 = vpack.c.b16 %v241, %v240
        %v245 = vpack.c.b16 %v243, %v242
        %vm248 = vcmask 261120
        %v250 = vsel %vm248, %v224, 0
        %252 = vmatprep.subr.bf16.mxu0 0
        %253 = vmatpush1.bf16.msra.mxu0 %v244
        %254 = vmatprep.subr.bf16.mxu0 0
        %255 = vmatpush1.bf16.msra.mxu0 %v245
        %256 = vmatprep.subr.bf16.mxu0 0
        %257 = vmatpush1.bf16.msra.mxu0 0
        %258 = vmatprep.subr.bf16.mxu0 0
        %259 = vmatpush1.bf16.msra.mxu0 0
        %260 = vmatprep.subr.bf16.mxu0 0
        %261 = vmatpush1.bf16.msra.mxu0 0
        %262 = vmatprep.subr.bf16.mxu0 0
        %263 = vmatpush1.bf16.msra.mxu0 0
        %264 = vmatprep.subr.bf16.mxu0 0
        %265 = vmatpush1.bf16.msra.mxu0 0
        %266 = vmatprep.subr.bf16.mxu0 0
        %267 = vmatpush1.bf16.msra.mxu0 0
        %268 = vmatprep.subr.bf16.mxu0 0
        %269 = vmatpush1.bf16.msra.mxu0 0
        %270 = vmatprep.subr.bf16.mxu0 0
        %271 = vmatpush1.bf16.msra.mxu0 0
        %272 = vmatprep.subr.bf16.mxu0 0
        %273 = vmatpush1.bf16.msra.mxu0 0
        %274 = vmatprep.subr.bf16.mxu0 0
        %275 = vmatpush1.bf16.msra.mxu0 0
        %276 = vmatprep.subr.bf16.mxu0 0
        %277 = vmatpush1.bf16.msra.mxu0 0
        %278 = vmatprep.subr.bf16.mxu0 0
        %279 = vmatpush1.bf16.msra.mxu0 0
        %280 = vmatprep.subr.bf16.mxu0 0
        %281 = vmatpush1.bf16.msra.mxu0 0
        %282 = vmatprep.subr.bf16.mxu0 0
        %283 = vmatpush1.bf16.msra.mxu0 0
        %284 = vmatprep.mubr.bf16.mxu0 0
        %285 = vmatmul.mubr.bf16.gmra.mrb[0].mxu0 %v250
        %v286 = vpop.f32.mrb[0].mxu0
        %v287 = vadd.f32 %v234, %v286
        %v288 = vpop.f32.mrb[0].mxu0
        %v289 = vpop.f32.mrb[0].mxu0
        %v290 = vpop.f32.mrb[0].mxu0
        %291 = vdwg.mxu0
        %v292 = vmax.f32 %v287, 0.0
        %v293 = vpack.c.bf16 %v292, %v292
        %v294 = vld [vmem:[%s4] sm:$0xf]
        %v295 = vld [vmem:[%s4 + $0x4] sm:$0xf]
        %v296 = vld [vmem:[%s4 + $0x8] sm:$0xf]
        %v297 = vld [vmem:[%s4 + $0xc] sm:$0xf]
        %v298 = vld [vmem:[%s4 + $0x10] sm:$0xf]
        %v299 = vld [vmem:[%s4 + $0x14] sm:$0xf]
        %v300 = vld [vmem:[%s4 + $0x18] sm:$0xf]
        %v301 = vld [vmem:[%s4 + $0x1c] sm:$0xf]
        %v302 = vld [vmem:[%s5] sm:$0x1]
        %v304 = vlaneseq
        %v305 = vshrl.u32 %v304, 7
        %v306 = vsub.s32 0, %v305
        %v307 = vrot.slane %v302, %v306
        %v317 = vunpack.c.l.b16 %v294
        %v318 = vunpack.c.l.b16 %v295
        %v319 = vunpack.c.l.b16 %v296
        %v320 = vunpack.c.l.b16 %v297
        %v321 = vunpack.c.l.b16 %v298
        %v322 = vunpack.c.l.b16 %v299
        %v323 = vunpack.c.l.b16 %v300
        %v324 = vunpack.c.l.b16 %v301
        %v325 = vpack.c.b16 %v318, %v317
        %v326 = vpack.c.b16 %v320, %v319
        %v327 = vpack.c.b16 %v322, %v321
        %v328 = vpack.c.b16 %v324, %v323
        %vm333 = vcmask 523264
        %v335 = vsel %vm333, %v293, 0
        %337 = vmatprep.subr.bf16.mxu0 0
        %338 = vmatpush1.bf16.msra.mxu0 %v325
        %339 = vmatprep.subr.bf16.mxu0 0
        %340 = vmatpush1.bf16.msra.mxu0 %v326
        %341 = vmatprep.subr.bf16.mxu0 0
        %342 = vmatpush1.bf16.msra.mxu0 %v327
        %343 = vmatprep.subr.bf16.mxu0 0
        %344 = vmatpush1.bf16.msra.mxu0 %v328
        %345 = vmatprep.subr.bf16.mxu0 0
        %346 = vmatpush1.bf16.msra.mxu0 0
        %347 = vmatprep.subr.bf16.mxu0 0
        %348 = vmatpush1.bf16.msra.mxu0 0
        %349 = vmatprep.subr.bf16.mxu0 0
        %350 = vmatpush1.bf16.msra.mxu0 0
        %351 = vmatprep.subr.bf16.mxu0 0
        %352 = vmatpush1.bf16.msra.mxu0 0
        %353 = vmatprep.subr.bf16.mxu0 0
        %354 = vmatpush1.bf16.msra.mxu0 0
        %355 = vmatprep.subr.bf16.mxu0 0
        %356 = vmatpush1.bf16.msra.mxu0 0
        %357 = vmatprep.subr.bf16.mxu0 0
        %358 = vmatpush1.bf16.msra.mxu0 0
        %359 = vmatprep.subr.bf16.mxu0 0
        %360 = vmatpush1.bf16.msra.mxu0 0
        %361 = vmatprep.subr.bf16.mxu0 0
        %362 = vmatpush1.bf16.msra.mxu0 0
        %363 = vmatprep.subr.bf16.mxu0 0
        %364 = vmatpush1.bf16.msra.mxu0 0
        %365 = vmatprep.subr.bf16.mxu0 0
        %366 = vmatpush1.bf16.msra.mxu0 0
        %367 = vmatprep.subr.bf16.mxu0 0
        %368 = vmatpush1.bf16.msra.mxu0 0
        %369 = vmatprep.mubr.bf16.mxu0 0
        %370 = vmatmul.mubr.bf16.gmra.mrb[0].mxu0 %v335
        %v371 = vpop.f32.mrb[0].mxu0
        %v372 = vadd.f32 %v307, %v371
        %v373 = vpop.f32.mrb[0].mxu0
        %v374 = vpop.f32.mrb[0].mxu0
        %v375 = vpop.f32.mrb[0].mxu0
        %376 = vdwg.mxu0
        %377 = vst.msk [vmem:[%s217] sm:$0xff] %vm248, %v372
        %s378 = sand.u32 %s139, 1
        %s379 = scalar_lea.sflag [#allocation5], %s378
        %s380 = sand.u32 %s139, 1
        %s381 = smul.addr %s380, 8
        %s382 = scalar_lea.vmem [#allocation4], %s381
        // Predicated region
        $region41: #{tpu_custom_call.1} parent=39 // pred_check
          %p383 = pneg %p149
        $region42: #{tpu_custom_call.1} parent=39 // pred_check_branch
          %385 = sbr.rel (%p383) target = $region44
        $region43: #{tpu_custom_call.1} parent=39 // pred_region
          %s387 = ssub.s32 128, 128
          %388 = vsyncadd %s379, %s387
          %s389 = smul.addr %s21, 128
          %s390 = scalar_lea.hbm %s6, %s389
          %s392 = sshll.u32 %s382, 4
          %s393 = int_to_ptr.vmem [resolvable:$true] %s392
          %395 = dma.vmem_to_hbm [thread:$0]  %s393, 128, %s390, %s379
        $region44: #{tpu_custom_call.1} parent=39 // pred_fallthru
          _
      $region40: #{tpu_custom_call.1} parent=5 // pred_fallthru
        _
      %p396 = scmp.le.s32.totalorder 2, %s16
      // Predicated region
      $region45: #{tpu_custom_call.1} parent=5 // pred_check
        %p397 = pneg %p396
      $region46: #{tpu_custom_call.1} parent=5 // pred_check_branch
        %399 = sbr.rel (%p397) target = $region48
      $region47: #{tpu_custom_call.1} parent=5 // pred_region
        %s400 = ssub.s32 %s16, 2
        // Predicated region
        $region49: #{tpu_custom_call.1} parent=47 // pred_check
          %p401 = pneg %p155
        $region50: #{tpu_custom_call.1} parent=47 // pred_check_branch
          %403 = sbr.rel (%p401) target = $region52
        $region51: #{tpu_custom_call.1} parent=47 // pred_region
          %s404 = sand.u32 %s140, 1
          %s405 = scalar_lea.sflag [#allocation5], %s404
          %s406 = sand.u32 %s140, 1
          %s407 = smul.addr %s406, 8
          %s408 = scalar_lea.vmem [#allocation4], %s407
          %409 = dma.done %s405, 128
        $region52: #{tpu_custom_call.1} parent=47 // pred_fallthru
          _
      $region48: #{tpu_custom_call.1} parent=5 // pred_fallthru
        _
    $region6: #{tpu_custom_call.1} parent=1 // loop_footer
      %s20 = sadd.s32 1, %s16
    $region7: #{tpu_custom_call.1} parent=1 // loop_footer_branch
      %15 = sbr.rel target = $region3
    $region8: #{tpu_custom_call.1} parent=1 // loop_exit
      _
    %410 = vsyncpa [#allocation5], 1
    %s411 = scalar_lea.sflag [#allocation5], 1
    %412 = vsyncpa %s411, 1

</llo_original>
